<compile_context>
chip_gen: v5e
topology: v5e:2x2
jax: 0.10.0
libtpu: 0.0.40
codegen_flags: <defaults>
</compile_context>

<pallas_src>
import numpy as np
import jax
import jax.numpy as jnp
from jax.experimental import pallas as pl
from jax.experimental.pallas import tpu as pltpu


def _round_up(x, m):
    return ((x + m - 1) // m) * m


def _vmem_limit_bytes():
    """Generation-aware scoped-VMEM limit with headroom for compiler temps."""
    try:
        cap = int(pltpu.get_tpu_info().vmem_capacity_bytes)
    except Exception:
        return None  # fall back to the compiler default
    # Leave ~12 MiB headroom for internal scratch / temporaries:
    #   v5e/v6e (128 MiB) -> ~116 MiB usable; v7x (64 MiB) -> ~52 MiB usable.
    return max(cap - 12 * 1024 * 1024, 32 * 1024 * 1024)


def fused_sage_kernel(a_ref, invdeg_ref, h0_ref, w_ref, b_ref, out_ref, h_scr):
    """One grid step == one SAGEConv('mean') layer.

    a_ref      : (Np, Np)       bf16  0/1 adjacency (bidirected + self-loops)
    invdeg_ref : (Np, 1)        f32   1/in-degree per node (0 for padded rows)
    h0_ref     : (Np, Dp)       bf16  initial node features (read at layer 0)
    w_ref      : (1, 2*Dp, Dp)  bf16  [W_self ; W_neigh] for this layer
    b_ref      : (1, 1, Dp)     f32   bias for this layer
    out_ref    : (Np, Dp)       f32   final node features (written at last layer)
    h_scr      : (Np, Dp)       bf16  VMEM-resident h, carried across layers
    """
    layer = pl.program_id(0)
    d_pad = h_scr.shape[1]

    @pl.when(layer == 0)
    def _():
        h_scr[...] = h0_ref[...]

    h = h_scr[...]                                                    # (Np, Dp) bf16

    # Mean aggregation: bf16 MXU matmul with f32 accumulate, then f32 1/deg scale.
    agg = jnp.dot(a_ref[...], h, preferred_element_type=jnp.float32)  # (Np, Dp) f32
    h_neigh = (agg * invdeg_ref[...]).astype(jnp.bfloat16)            # (Np, Dp) bf16

    # Two MXU calls on 128-aligned slices of the stacked weights (no concat copy).
    w_self = w_ref[0, :d_pad, :]                                      # (Dp, Dp) bf16
    w_neigh = w_ref[0, d_pad:, :]                                     # (Dp, Dp) bf16
    out = (jnp.dot(h, w_self, preferred_element_type=jnp.float32)
           + jnp.dot(h_neigh, w_neigh, preferred_element_type=jnp.float32)
           + b_ref[0])                                                # (Np, Dp) f32

    # Carry to the next layer in bf16.
    h_scr[...] = out.astype(jnp.bfloat16)

    # Only the last layer's result ever reaches HBM; skip intermediate stores.
    @pl.when(layer == pl.num_programs(0) - 1)
    def _():
        out_ref[...] = out.astype(out_ref.dtype)


def sage_forward_pallas(a01, inv_deg, h0_pad, w_stack, b_stack, num_layers):
    n_pad, d_pad = h0_pad.shape
    vmem_limit = _vmem_limit_bytes()
    cp_kwargs = dict(dimension_semantics=("arbitrary",))  # layer loop is sequential
    if vmem_limit is not None:
        cp_kwargs["vmem_limit_bytes"] = vmem_limit

    return pl.pallas_call(
        fused_sage_kernel,
        out_shape=jax.ShapeDtypeStruct((n_pad, d_pad), jnp.float32),
        grid_spec=pltpu.PrefetchScalarGridSpec(
            num_scalar_prefetch=0,
            grid=(num_layers,),
            in_specs=[
                # Constant block index -> DMA'd once, VMEM-resident across the
                # layer loop; Buffered(1) avoids pointless 2x VMEM double buffering.
                pl.BlockSpec((n_pad, n_pad), lambda l: (0, 0),
                             pipeline_mode=pl.Buffered(1)),
                pl.BlockSpec((n_pad, 1), lambda l: (0, 0),
                             pipeline_mode=pl.Buffered(1)),
                pl.BlockSpec((n_pad, d_pad), lambda l: (0, 0),
                             pipeline_mode=pl.Buffered(1)),
                # Per-layer weights/bias: default double-buffered prefetch.
                pl.BlockSpec((1, 2 * d_pad, d_pad), lambda l: (l, 0, 0)),
                pl.BlockSpec((1, 1, d_pad), lambda l: (l, 0, 0)),
            ],
            out_specs=pl.BlockSpec((n_pad, d_pad), lambda l: (0, 0),
                                   pipeline_mode=pl.Buffered(1)),
            scratch_shapes=[pltpu.VMEM((n_pad, d_pad), jnp.bfloat16)],
        ),
        compiler_params=pltpu.CompilerParams(**cp_kwargs),
    )(a01, inv_deg, h0_pad, w_stack, b_stack)


class GraphSAGEPallas:
    """Mirror of the PyTorch GraphSAGE module (forward only)."""

    def __init__(self, latent_dim, num_layers, src, dst, num_nodes, key):
        self.latent_dim = latent_dim
        self.num_layers = num_layers
        self.num_nodes = num_nodes
        # Lane-dense padding: N and D to multiples of 128.
        self.n_pad = max(_round_up(num_nodes, 128), 128)
        self.d_pad = max(_round_up(latent_dim, 128), 128)

        # --- graph: bidirected + self-loops, as exact 0/1 bf16 + f32 inv-degree ---
        adj = np.zeros((self.n_pad, self.n_pad), dtype=np.float32)
        for s, t in zip(src, dst):
            adj[t, s] = 1.0   # edge s -> t
            adj[s, t] = 1.0   # bidirected: t -> s
        idx = np.arange(num_nodes)
        adj[idx, idx] = 1.0   # self-loops (real nodes only)
        # Padded-row/column invariant: padded nodes must never feed real nodes.
        assert np.all(adj[num_nodes:, :] == 0.0) and np.all(adj[:, num_nodes:] == 0.0), \
            "padded adjacency rows/columns must stay exactly zero"
        deg = adj.sum(axis=1)
        inv_deg = np.where(deg > 0, 1.0 / np.maximum(deg, 1.0), 0.0).astype(np.float32)
        # TODO(synk): store adjacency as int8/fp8 and upcast in-kernel for large Np
        # (halves the dominant VMEM/HBM footprint, mainly relevant on v7x).
        self.adj01 = jnp.asarray(adj, jnp.bfloat16)
        self.inv_deg = jnp.asarray(inv_deg.reshape(-1, 1), jnp.float32)

        # --- parameters: stacked [W_self ; W_neigh] (bf16) and bias (f32), zero-padded ---
        scale = 1.0 / np.sqrt(latent_dim)
        w_stack = np.zeros((num_layers, 2 * self.d_pad, self.d_pad), dtype=np.float32)
        b_stack = np.zeros((num_layers, 1, self.d_pad), dtype=np.float32)
        for i in range(num_layers):
            k1, k2, k3, key = jax.random.split(key, 4)
            w_self = np.asarray(jax.random.uniform(
                k1, (latent_dim, latent_dim), jnp.float32, -scale, scale))
            w_neigh = np.asarray(jax.random.uniform(
                k2, (latent_dim, latent_dim), jnp.float32, -scale, scale))
            bias = np.asarray(jax.random.uniform(
                k3, (latent_dim,), jnp.float32, -scale, scale))
            w_stack[i, :latent_dim, :latent_dim] = w_self
            w_stack[i, self.d_pad:self.d_pad + latent_dim, :latent_dim] = w_neigh
            b_stack[i, 0, :latent_dim] = bias   # padded lanes stay exactly zero
        self.w_stack = jnp.asarray(w_stack, jnp.bfloat16)
        self.b_stack = jnp.asarray(b_stack, jnp.float32)

    def _pad_features(self, h):
        n, d = h.shape
        h_pad = jnp.zeros((self.n_pad, self.d_pad), jnp.bfloat16)
        return h_pad.at[:n, :d].set(h.astype(jnp.bfloat16))

    def forward(self, h):
        n, d = h.shape
        out_pad = sage_forward_pallas(
            self.adj01, self.inv_deg, self._pad_features(h),
            self.w_stack, self.b_stack, self.num_layers)
        return out_pad[:n, :d]


def reference_forward(model, h):
    """Pure-JAX reference with the same precision model (bf16 MXU ops, f32 accum)."""
    n, d = h.shape
    d_pad = model.d_pad
    hp = jnp.zeros((model.n_pad, model.d_pad), jnp.bfloat16).at[:n, :d].set(
        h.astype(jnp.bfloat16))
    out = None
    for l in range(model.num_layers):
        agg = jnp.dot(model.adj01, hp, preferred_element_type=jnp.float32)
        h_neigh = (agg * model.inv_deg).astype(jnp.bfloat16)
        w = model.w_stack[l]
        out = (jnp.dot(hp, w[:d_pad], preferred_element_type=jnp.float32)
               + jnp.dot(h_neigh, w[d_pad:], preferred_element_type=jnp.float32)
               + model.b_stack[l, 0])
        hp = out.astype(jnp.bfloat16)
    return out[:n, :d]


if __name__ == "__main__":
    key = jax.random.PRNGKey(0)

    num_nodes = 8
    latent_dim = 32
    num_layers = 2
    # simple chain graph (src -> dst); module bidirects it and adds self-loops
    src = [0, 1, 2, 3, 4, 5, 6]
    dst = [1, 2, 3, 4, 5, 6, 7]

    k_h, k_p = jax.random.split(key)
    h = jax.random.normal(k_h, (num_nodes, latent_dim), jnp.float32)

    model = GraphSAGEPallas(latent_dim, num_layers, src, dst, num_nodes, k_p)

    out = model.forward(h)
    out = jax.block_until_ready(out)

    ref = reference_forward(model, h)
    np.testing.assert_allclose(np.asarray(out), np.asarray(ref), rtol=1e-2, atol=1e-2)

    print("KERNEL_OK")
</pallas_src>

<mosaic_0001>
module attributes {stable_mosaic.version = 11 : i64} {
  func.func @fused_sage_kernel(%arg0: i32, %arg1: memref<128x128xbf16, #tpu.memory_space<vmem>>, %arg2: memref<128x1xf32, #tpu.memory_space<vmem>>, %arg3: memref<128x128xbf16, #tpu.memory_space<vmem>>, %arg4: memref<1x256x128xbf16, #tpu.memory_space<vmem>>, %arg5: memref<1x1x128xf32, #tpu.memory_space<vmem>>, %arg6: memref<128x128xf32, #tpu.memory_space<vmem>>, %arg7: memref<128x128xbf16, #tpu.memory_space<vmem>>) attributes {dimension_semantics = [#tpu.dimension_semantics<arbitrary>], iteration_bounds = array<i64: 2>, scalar_prefetch = 0 : i64, scratch_operands = 1 : i64, tpu.core_type = #tpu.core_type<tc>, window_params = [{pipeline_mode = #tpu.pipeline_mode<synchronous>, transform_indices = @transform_0, window_bounds = array<i64: 128, 128>}, {pipeline_mode = #tpu.pipeline_mode<synchronous>, transform_indices = @transform_1, window_bounds = array<i64: 128, 1>}, {pipeline_mode = #tpu.pipeline_mode<synchronous>, transform_indices = @transform_2, window_bounds = array<i64: 128, 128>}, {transform_indices = @transform_3, window_bounds = array<i64: 1, 256, 128>}, {transform_indices = @transform_4, window_bounds = array<i64: 1, 1, 128>}, {pipeline_mode = #tpu.pipeline_mode<synchronous>, transform_indices = @transform_5, window_bounds = array<i64: 128, 128>}]} {
    %c0_i32 = arith.constant 0 : i32
    %0 = arith.cmpi eq, %arg0, %c0_i32 : i32
    %1 = arith.extui %0 : i1 to i32
    %c0_i32_0 = arith.constant 0 : i32
    %2 = arith.cmpi ne, %1, %c0_i32_0 : i32
    scf.if %2 {
      %c0_19 = arith.constant 0 : index
      %c0_20 = arith.constant 0 : index
      %26 = vector.load %arg3[%c0_19, %c0_20] : memref<128x128xbf16, #tpu.memory_space<vmem>>, vector<128x128xbf16>
      %c0_21 = arith.constant 0 : index
      %c0_22 = arith.constant 0 : index
      %27 = vector.load %arg7[%c0_21, %c0_22] : memref<128x128xbf16, #tpu.memory_space<vmem>>, vector<128x128xbf16>
      tpu.vector_store %arg7[%c0_21, %c0_22], %26 {strides = array<i32>} : memref<128x128xbf16, #tpu.memory_space<vmem>>, vector<128x128xbf16>,
    } else {
    }
    %c0 = arith.constant 0 : index
    %c0_1 = arith.constant 0 : index
    %3 = vector.load %arg7[%c0, %c0_1] : memref<128x128xbf16, #tpu.memory_space<vmem>>, vector<128x128xbf16>
    %c0_2 = arith.constant 0 : index
    %c0_3 = arith.constant 0 : index
    %4 = vector.load %arg1[%c0_2, %c0_3] : memref<128x128xbf16, #tpu.memory_space<vmem>>, vector<128x128xbf16>
    %cst = arith.constant dense<0.000000e+00> : vector<128x128xf32>
    %5 = tpu.matmul %4, %3, %cst {dimension_numbers = #tpu.dot_dimension_numbers<[1], [0], [0], [1], [0, 0, 1, 1], [], []>} : vector<128x128xbf16>, vector<128x128xbf16>, vector<128x128xf32> -> vector<128x128xf32>
    %c0_4 = arith.constant 0 : index
    %c0_5 = arith.constant 0 : index
    %6 = vector.load %arg2[%c0_4, %c0_5] : memref<128x1xf32, #tpu.memory_space<vmem>>, vector<128x1xf32>
    %7 = vector.broadcast %6 : vector<128x1xf32> to vector<128x128xf32>
    %8 = arith.mulf %5, %7 : vector<128x128xf32>
    %9 = arith.truncf %8 : vector<128x128xf32> to vector<128x128xbf16>
    %c0_6 = arith.constant 0 : index
    %c0_7 = arith.constant 0 : index
    %c0_8 = arith.constant 0 : index
    %10 = vector.load %arg4[%c0_6, %c0_7, %c0_8] : memref<1x256x128xbf16, #tpu.memory_space<vmem>>, vector<1x128x128xbf16>
    %11 = vector.shape_cast %10 : vector<1x128x128xbf16> to vector<128x128xbf16>
    %c0_9 = arith.constant 0 : index
    %c128 = arith.constant 128 : index
    %c0_10 = arith.constant 0 : index
    %12 = vector.load %arg4[%c0_9, %c128, %c0_10] : memref<1x256x128xbf16, #tpu.memory_space<vmem>>, vector<1x128x128xbf16>
    %13 = vector.shape_cast %12 : vector<1x128x128xbf16> to vector<128x128xbf16>
    %cst_11 = arith.constant dense<0.000000e+00> : vector<128x128xf32>
    %14 = tpu.matmul %3, %11, %cst_11 {dimension_numbers = #tpu.dot_dimension_numbers<[1], [0], [0], [1], [0, 0, 1, 1], [], []>} : vector<128x128xbf16>, vector<128x128xbf16>, vector<128x128xf32> -> vector<128x128xf32>
    %cst_12 = arith.constant dense<0.000000e+00> : vector<128x128xf32>
    %15 = tpu.matmul %9, %13, %cst_12 {dimension_numbers = #tpu.dot_dimension_numbers<[1], [0], [0], [1], [0, 0, 1, 1], [], []>} : vector<128x128xbf16>, vector<128x128xbf16>, vector<128x128xf32> -> vector<128x128xf32>
    %16 = arith.addf %14, %15 : vector<128x128xf32>
    %c0_13 = arith.constant 0 : index
    %c0_14 = arith.constant 0 : index
    %c0_15 = arith.constant 0 : index
    %17 = vector.load %arg5[%c0_13, %c0_14, %c0_15] : memref<1x1x128xf32, #tpu.memory_space<vmem>>, vector<1x1x128xf32>
    %18 = vector.shape_cast %17 : vector<1x1x128xf32> to vector<1x128xf32>
    %19 = vector.broadcast %18 : vector<1x128xf32> to vector<128x128xf32>
    %20 = arith.addf %16, %19 : vector<128x128xf32>
    %21 = arith.truncf %20 : vector<128x128xf32> to vector<128x128xbf16>
    %c0_16 = arith.constant 0 : index
    %c0_17 = arith.constant 0 : index
    %22 = vector.load %arg7[%c0_16, %c0_17] : memref<128x128xbf16, #tpu.memory_space<vmem>>, vector<128x128xbf16>
    tpu.vector_store %arg7[%c0_16, %c0_17], %21 {strides = array<i32>} : memref<128x128xbf16, #tpu.memory_space<vmem>>, vector<128x128xbf16>,
    %c1_i32 = arith.constant 1 : i32
    %23 = arith.cmpi eq, %arg0, %c1_i32 : i32
    %24 = arith.extui %23 : i1 to i32
    %c0_i32_18 = arith.constant 0 : i32
    %25 = arith.cmpi ne, %24, %c0_i32_18 : i32
    scf.if %25 {
      %c0_19 = arith.constant 0 : index
      %c0_20 = arith.constant 0 : index
      %26 = vector.load %arg6[%c0_19, %c0_20] : memref<128x128xf32, #tpu.memory_space<vmem>>, vector<128x128xf32>
      tpu.vector_store %arg6[%c0_19, %c0_20], %20 {strides = array<i32>} : memref<128x128xf32, #tpu.memory_space<vmem>>, vector<128x128xf32>,
    } else {
    }
    return
  }
  func.func @transform_0(%arg0: i32) -> (i32, i32) {
    %c0_i32 = arith.constant 0 : i32
    %c0_i32_0 = arith.constant 0 : i32
    %c0_i32_1 = arith.constant 0 : i32
    return %c0_i32, %c0_i32_0 : i32, i32
  }
  func.func @transform_1(%arg0: i32) -> (i32, i32) {
    %c0_i32 = arith.constant 0 : i32
    %c0_i32_0 = arith.constant 0 : i32
    %c0_i32_1 = arith.constant 0 : i32
    return %c0_i32, %c0_i32_0 : i32, i32
  }
  func.func @transform_2(%arg0: i32) -> (i32, i32) {
    %c0_i32 = arith.constant 0 : i32
    %c0_i32_0 = arith.constant 0 : i32
    %c0_i32_1 = arith.constant 0 : i32
    return %c0_i32, %c0_i32_0 : i32, i32
  }
  func.func @transform_3(%arg0: i32) -> (i32, i32, i32) {
    %c0_i32 = arith.constant 0 : i32
    %c0_i32_0 = arith.constant 0 : i32
    %c0_i32_1 = arith.constant 0 : i32
    return %arg0, %c0_i32, %c0_i32_0 : i32, i32, i32
  }
  func.func @transform_4(%arg0: i32) -> (i32, i32, i32) {
    %c0_i32 = arith.constant 0 : i32
    %c0_i32_0 = arith.constant 0 : i32
    %c0_i32_1 = arith.constant 0 : i32
    return %arg0, %c0_i32, %c0_i32_0 : i32, i32, i32
  }
  func.func @transform_5(%arg0: i32) -> (i32, i32) {
    %c0_i32 = arith.constant 0 : i32
    %c0_i32_0 = arith.constant 0 : i32
    %c0_i32_1 = arith.constant 0 : i32
    return %c0_i32, %c0_i32_0 : i32, i32
  }
}

</mosaic_0001>

<llo_original>
// kernel: tpu_custom_call.1
$region0: #{tpu_custom_call.1}
  #allocation0 [shape = 'u32[]', space=smem, size = 0x4, offset = 0x4, fixed_abs, tag = 'smem constant byte address 0x4 - core index']
  #allocation1 [shape = 'u32[72,128]{1,0:T(1,128)}', space=vmem, size = 0x9000, scoped, tag = 'internal scratch']
  #allocation2 [shape = 'bf16[128,128]{1,0:T(8,128)(2,1)}', space=vmem, size = 0x8000, scoped, tag = 'scratch operand']
  %s0 = inlined_call_operand.vmem [shape: bf16[128,128], index: 0, kind: input, shape index: {}]
  %s1 = inlined_call_operand.vmem [shape: f32[128,1], index: 1, kind: input, shape index: {}]
  %s2 = inlined_call_operand.vmem [shape: bf16[128,128], index: 2, kind: input, shape index: {}]
  %s3 = inlined_call_operand.hbm [shape: bf16[2,256,128], index: 3, kind: input, shape index: {}]
  %s4 = inlined_call_operand.vmem [shape: f32[2,1,128], index: 4, kind: input, shape index: {}]
  %s5 = inlined_call_operand.hbm [shape: f32[128,128], index: 5, kind: output, shape index: {}]
  %s6 = sld [smem:[#allocation0]]
  $region65: #{tpu_custom_call.1} parent=0
    _
  %s8 = ssub.s32 1, %s6
  %s9 = scalar_select 0, %s8, %s6
  $region1: #{tpu_custom_call.1} parent=0
    #allocation3 [shape = 'u8[131072]{0}', space=vmem, size = 0x20000, scoped, tag = 'input window, operand 3']
    #allocation4 [shape = 's32[2]{0}', space=sflag, size = 0x8, scoped, tag = 'scoped memory for tpu_custom_call.1']
    #allocation5 [shape = 's32[2]{0}', space=sflag, size = 0x8, scoped, tag = 'scoped memory for tpu_custom_call.1']
    #allocation6 [shape = 'u8[65536]{0}', space=vmem, size = 0x10000, scoped, tag = 'output window, operand 0, single buffered']
    %10 = vsyncpa [#allocation4], 0
    %s11 = scalar_lea.sflag [#allocation4], 1
    %12 = vsyncpa %s11, 0
    %13 = vsyncpa [#allocation5], 0
    loop: start=0, step=1, limit=4
    $region2: #{tpu_custom_call.1} parent=1 // loop_pre_header
      _
    $region3: #{tpu_custom_call.1} parent=1 // loop_header
      %s15 = sphi 0, %s19
      %p16 = scmp.ge.s32.totalorder %s15, 4
      %s23 = sphi 0, %s23
      %s25 = sphi 0, %s23
      %s26 = sphi 0, %s25
      %s40 = sphi 0, %s26
      %s44 = sphi 0, %s44
      %s46 = sphi 0, %s44
      %s47 = sphi 0, %s46
      %s61 = sphi 0, %s47
      %s65 = sphi 0, %s65
      %s67 = sphi 0, %s65
      %s68 = sphi 0, %s67
      %s82 = sphi 0, %s68
      %s88 = sphi 0, %s90
      %s91 = sphi 0, %s88
      %s92 = sphi 0, %s91
      %s108 = sphi 0, %s92
      %s114 = sphi 0, %s116
      %s117 = sphi 0, %s114
      %s118 = sphi 0, %s117
      %s134 = sphi 0, %s118
      %s138 = sphi 0, %s138
      %s140 = sphi 0, %s138
      %s141 = sphi 0, %s140
      %s155 = sphi 0, %s141
    $region4: #{tpu_custom_call.1} parent=1 // loop_header_branch
      %18 = sbr.rel (%p16) target = $region8
    $region5: #{tpu_custom_call.1} parent=1 // loop_body
      %s20 = ssub.s32 %s15, 1
      %s21 = ssub.s32 %s15, 2
      %s22 = sadd.s32 %s15, 1
      %s24 = sadd.s32 %s23, 1
      %p27 = scmp.eq.s32.totalorder %s15, 1
      %p28 = scmp.ne.s32.totalorder %s23, %s25
      %p29 = scmp.eq.s32.totalorder %s15, 0
      %p30 = por %p28, %p29
      %p31 = scmp.ne.s32.totalorder %s23, %s25
      %p32 = scmp.eq.s32.totalorder %s20, 1
      %p33 = por %p31, %p32
      %p34 = scmp.ne.s32.totalorder %s25, %s26
      %p35 = scmp.eq.s32.totalorder %s20, 0
      %p36 = por %p34, %p35
      %p37 = scmp.ne.s32.totalorder %s25, %s26
      %p38 = scmp.eq.s32.totalorder %s21, 1
      %p39 = por %p37, %p38
      %p41 = scmp.ne.s32.totalorder %s26, %s40
      %p42 = scmp.eq.s32.totalorder %s21, 0
      %p43 = por %p41, %p42
      %s45 = sadd.s32 %s44, 1
      %p48 = scmp.eq.s32.totalorder %s15, 1
      %p49 = scmp.ne.s32.totalorder %s44, %s46
      %p50 = scmp.eq.s32.totalorder %s15, 0
      %p51 = por %p49, %p50
      %p52 = scmp.ne.s32.totalorder %s44, %s46
      %p53 = scmp.eq.s32.totalorder %s20, 1
      %p54 = por %p52, %p53
      %p55 = scmp.ne.s32.totalorder %s46, %s47
      %p56 = scmp.eq.s32.totalorder %s20, 0
      %p57 = por %p55, %p56
      %p58 = scmp.ne.s32.totalorder %s46, %s47
      %p59 = scmp.eq.s32.totalorder %s21, 1
      %p60 = por %p58, %p59
      %p62 = scmp.ne.s32.totalorder %s47, %s61
      %p63 = scmp.eq.s32.totalorder %s21, 0
      %p64 = por %p62, %p63
      %s66 = sadd.s32 %s65, 1
      %p69 = scmp.eq.s32.totalorder %s15, 1
      %p70 = scmp.ne.s32.totalorder %s65, %s67
      %p71 = scmp.eq.s32.totalorder %s15, 0
      %p72 = por %p70, %p71
      %p73 = scmp.ne.s32.totalorder %s65, %s67
      %p74 = scmp.eq.s32.totalorder %s20, 1
      %p75 = por %p73, %p74
      %p76 = scmp.ne.s32.totalorder %s67, %s68
      %p77 = scmp.eq.s32.totalorder %s20, 0
      %p78 = por %p76, %p77
      %p79 = scmp.ne.s32.totalorder %s67, %s68
      %p80 = scmp.eq.s32.totalorder %s21, 1
      %p81 = por %p79, %p80
      %p83 = scmp.ne.s32.totalorder %s68, %s82
      %p84 = scmp.eq.s32.totalorder %s21, 0
      %p85 = por %p83, %p84
      %s86 = ssub.s32 %s15, %s22
      %p87 = scmp.eq.s32.totalorder %s86, 0
      %s89 = sadd.s32 %s88, 1
      %s90 = scalar_select %p87, %s88, %s89
      %p93 = pneg %p87
      %p94 = scmp.eq.s32.totalorder %s15, 1
      %p95 = por %p93, %p94
      %p96 = scmp.ne.s32.totalorder %s88, %s91
      %p97 = scmp.eq.s32.totalorder %s15, 0
      %p98 = por %p96, %p97
      %p99 = scmp.ne.s32.totalorder %s88, %s91
      %p100 = scmp.eq.s32.totalorder %s20, 1
      %p101 = por %p99, %p100
      %p102 = scmp.ne.s32.totalorder %s91, %s92
      %p103 = scmp.eq.s32.totalorder %s20, 0
      %p104 = por %p102, %p103
      %p105 = scmp.ne.s32.totalorder %s91, %s92
      %p106 = scmp.eq.s32.totalorder %s21, 1
      %p107 = por %p105, %p106
      %p109 = scmp.ne.s32.totalorder %s92, %s108
      %p110 = scmp.eq.s32.totalorder %s21, 0
      %p111 = por %p109, %p110
      %s112 = ssub.s32 %s15, %s22
      %p113 = scmp.eq.s32.totalorder %s112, 0
      %s115 = sadd.s32 %s114, 1
      %s116 = scalar_select %p113, %s114, %s115
      %p119 = pneg %p113
      %p120 = scmp.eq.s32.totalorder %s15, 1
      %p121 = por %p119, %p120
      %p122 = scmp.ne.s32.totalorder %s114, %s117
      %p123 = scmp.eq.s32.totalorder %s15, 0
      %p124 = por %p122, %p123
      %p125 = scmp.ne.s32.totalorder %s114, %s117
      %p126 = scmp.eq.s32.totalorder %s20, 1
      %p127 = por %p125, %p126
      %p128 = scmp.ne.s32.totalorder %s117, %s118
      %p129 = scmp.eq.s32.totalorder %s20, 0
      %p130 = por %p128, %p129
      %p131 = scmp.ne.s32.totalorder %s117, %s118
      %p132 = scmp.eq.s32.totalorder %s21, 1
      %p133 = por %p131, %p132
      %p135 = scmp.ne.s32.totalorder %s118, %s134
      %p136 = scmp.eq.s32.totalorder %s21, 0
      %p137 = por %p135, %p136
      %s139 = sadd.s32 %s138, 1
      %p142 = scmp.eq.s32.totalorder %s15, 1
      %p143 = scmp.ne.s32.totalorder %s138, %s140
      %p144 = scmp.eq.s32.totalorder %s15, 0
      %p145 = por %p143, %p144
      %p146 = scmp.ne.s32.totalorder %s138, %s140
      %p147 = scmp.eq.s32.totalorder %s20, 1
      %p148 = por %p146, %p147
      %p149 = scmp.ne.s32.totalorder %s140, %s141
      %p150 = scmp.eq.s32.totalorder %s20, 0
      %p151 = por %p149, %p150
      %p152 = scmp.ne.s32.totalorder %s140, %s141
      %p153 = scmp.eq.s32.totalorder %s21, 1
      %p154 = por %p152, %p153
      %p156 = scmp.ne.s32.totalorder %s141, %s155
      %p157 = scmp.eq.s32.totalorder %s21, 0
      %p158 = por %p156, %p157
      %p159 = scmp.le.s32.totalorder 1, %s15
      %p160 = scmp.lt.s32.totalorder %s15, 3
      %p161 = pnand %p159, %p160
      %p162 = pneg %p161
      // Predicated region
      $region9: #{tpu_custom_call.1} parent=5 // pred_check
        _
      $region10: #{tpu_custom_call.1} parent=5 // pred_check_branch
        %164 = sbr.rel (%p161) target = $region12
      $region11: #{tpu_custom_call.1} parent=5 // pred_region
        %s165 = ssub.s32 %s15, 1
        // Predicated region
        $region13: #{tpu_custom_call.1} parent=11 // pred_check
          %p166 = pneg %p36
        $region14: #{tpu_custom_call.1} parent=11 // pred_check_branch
          %168 = sbr.rel (%p166) target = $region16
        $region15: #{tpu_custom_call.1} parent=11 // pred_region
          _
        $region16: #{tpu_custom_call.1} parent=11 // pred_fallthru
          _
        // Predicated region
        $region17: #{tpu_custom_call.1} parent=11 // pred_check
          %p169 = pneg %p57
        $region18: #{tpu_custom_call.1} parent=11 // pred_check_branch
          %171 = sbr.rel (%p169) target = $region20
        $region19: #{tpu_custom_call.1} parent=11 // pred_region
          _
        $region20: #{tpu_custom_call.1} parent=11 // pred_fallthru
          _
        // Predicated region
        $region21: #{tpu_custom_call.1} parent=11 // pred_check
          %p172 = pneg %p78
        $region22: #{tpu_custom_call.1} parent=11 // pred_check_branch
          %174 = sbr.rel (%p172) target = $region24
        $region23: #{tpu_custom_call.1} parent=11 // pred_region
          _
        $region24: #{tpu_custom_call.1} parent=11 // pred_fallthru
          _
      $region12: #{tpu_custom_call.1} parent=5 // pred_fallthru
        _
      %p175 = scmp.lt.s32.totalorder %s15, 2
      // Predicated region
      $region25: #{tpu_custom_call.1} parent=5 // pred_check
        %p176 = pneg %p175
      $region26: #{tpu_custom_call.1} parent=5 // pred_check_branch
        %178 = sbr.rel (%p176) target = $region28
      $region27: #{tpu_custom_call.1} parent=5 // pred_region
        // Predicated region
        $region29: #{tpu_custom_call.1} parent=27 // pred_check
          %p179 = pneg %p98
        $region30: #{tpu_custom_call.1} parent=27 // pred_check_branch
          %181 = sbr.rel (%p179) target = $region32
        $region31: #{tpu_custom_call.1} parent=27 // pred_region
          %s182 = sand.u32 %s88, 1
          %s183 = scalar_lea.sflag [#allocation4], %s182
          %s184 = sand.u32 %s88, 1
          %s185 = smul.addr %s184, 128
          %s186 = scalar_lea.vmem [#allocation3], %s185
          %188 = vsyncadd %s183, 0
          %s189 = smul.addr %s15, 32
          %s190 = smul.addr %s189, 4
          %s191 = scalar_lea.hbm %s3, %s190
          %s192 = sshll.u32 %s191, 4
          %s193 = int_to_ptr.hbm [resolvable:$true] %s192
          %s194 = sshll.u32 %s186, 4
          %s195 = int_to_ptr.vmem [resolvable:$true] %s194
          %200 = dma.hbm_to_vmem [thread:$0]  %s193, 2048, %s195, %s183, 64, 64, 4
        $region32: #{tpu_custom_call.1} parent=27 // pred_fallthru
          _
        // Predicated region
        $region33: #{tpu_custom_call.1} parent=27 // pred_check
          %p201 = pneg %p124
        $region34: #{tpu_custom_call.1} parent=27 // pred_check_branch
          %203 = sbr.rel (%p201) target = $region36
        $region35: #{tpu_custom_call.1} parent=27 // pred_region
          %p204 = scmp.lt.s32.totalorder %s15, 1
          %s205 = scalar_select %p204, %s15, 1
          %s206 = scalar_lea.vmem %s4, %s205
        $region36: #{tpu_custom_call.1} parent=27 // pred_fallthru
          _
      $region28: #{tpu_custom_call.1} parent=5 // pred_fallthru
        _
      %p207 = scmp.le.s32.totalorder 1, %s15
      %p208 = scmp.lt.s32.totalorder %s15, 3
      %p209 = pnand %p207, %p208
      %p210 = pneg %p209
      // Predicated region
      $region37: #{tpu_custom_call.1} parent=5 // pred_check
        _
      $region38: #{tpu_custom_call.1} parent=5 // pred_check_branch
        %212 = sbr.rel (%p209) target = $region40
      $region39: #{tpu_custom_call.1} parent=5 // pred_region
        %s213 = ssub.s32 %s15, 1
        %s214 = sand.u32 %s91, 1
        %s215 = scalar_lea.sflag [#allocation4], %s214
        %s216 = sand.u32 %s91, 1
        %s217 = smul.addr %s216, 128
        %s218 = scalar_lea.vmem [#allocation3], %s217
        // Predicated region
        $region41: #{tpu_custom_call.1} parent=39 // pred_check
          %p219 = pneg %p104
        $region42: #{tpu_custom_call.1} parent=39 // pred_check_branch
          %221 = sbr.rel (%p219) target = $region44
        $region43: #{tpu_custom_call.1} parent=39 // pred_region
          %223 = dma.done %s215, 2048
        $region44: #{tpu_custom_call.1} parent=39 // pred_fallthru
          _
        %p224 = pneg %p36
        %p225 = pneg %p33
        %p226 = pneg %p57
        %p227 = pneg %p54
        %p228 = pneg %p78
        %p229 = pneg %p75
        %s230 = sand.u32 %s91, 1
        %s231 = scalar_lea.sflag [#allocation4], %s230
        %s232 = sand.u32 %s91, 1
        %s233 = smul.addr %s232, 128
        %s234 = scalar_lea.vmem [#allocation3], %s233
        %p235 = pneg %p104
        %p236 = pneg %p101
        %p237 = scmp.lt.s32.totalorder %s20, 1
        %s238 = scalar_select %p237, %s20, 1
        %s239 = scalar_lea.vmem %s4, %s238
        %p240 = pneg %p130
        %p241 = pneg %p127
        %p242 = pneg %p151
        %p243 = pneg %p148
        %p244 = scmp.lt.s32.totalorder %s20, 1
        %s245 = scalar_select %p244, %s20, 1
        %s246 = scalar_lea.vmem %s4, %s245
        %p247 = scmp.eq.s32.totalorder %s20, 0
        // Predicated region
        $region45: #{tpu_custom_call.1} parent=39 // pred_check
          %p248 = pneg %p247
        $region46: #{tpu_custom_call.1} parent=39 // pred_check_branch
          %250 = sbr.rel (%p248) target = $region48
        $region47: #{tpu_custom_call.1} parent=39 // pred_region
          %v251 = vld [vmem:[%s2] sm:$0xf]
          %v252 = vld [vmem:[%s2 + $0x4] sm:$0xf]
          %v253 = vld [vmem:[%s2 + $0x8] sm:$0xf]
          %v254 = vld [vmem:[%s2 + $0xc] sm:$0xf]
          %v255 = vld [vmem:[%s2 + $0x10] sm:$0xf]
          %v256 = vld [vmem:[%s2 + $0x14] sm:$0xf]
          %v257 = vld [vmem:[%s2 + $0x18] sm:$0xf]
          %v258 = vld [vmem:[%s2 + $0x1c] sm:$0xf]
          %v259 = vld [vmem:[%s2 + $0x20] sm:$0xf]
          %v260 = vld [vmem:[%s2 + $0x24] sm:$0xf]
          %v261 = vld [vmem:[%s2 + $0x28] sm:$0xf]
          %v262 = vld [vmem:[%s2 + $0x2c] sm:$0xf]
          %v263 = vld [vmem:[%s2 + $0x30] sm:$0xf]
          %v264 = vld [vmem:[%s2 + $0x34] sm:$0xf]
          %v265 = vld [vmem:[%s2 + $0x38] sm:$0xf]
          %v266 = vld [vmem:[%s2 + $0x3c] sm:$0xf]
          %267 = vst [vmem:[#allocation2] sm:$0xf] %v251
          %268 = vst [vmem:[#allocation2 + $0x4] sm:$0xf] %v252
          %269 = vst [vmem:[#allocation2 + $0x8] sm:$0xf] %v253
          %270 = vst [vmem:[#allocation2 + $0xc] sm:$0xf] %v254
          %271 = vst [vmem:[#allocation2 + $0x10] sm:$0xf] %v255
          %272 = vst [vmem:[#allocation2 + $0x14] sm:$0xf] %v256
          %273 = vst [vmem:[#allocation2 + $0x18] sm:$0xf] %v257
          %274 = vst [vmem:[#allocation2 + $0x1c] sm:$0xf] %v258
          %275 = vst [vmem:[#allocation2 + $0x20] sm:$0xf] %v259
          %276 = vst [vmem:[#allocation2 + $0x24] sm:$0xf] %v260
          %277 = vst [vmem:[#allocation2 + $0x28] sm:$0xf] %v261
          %278 = vst [vmem:[#allocation2 + $0x2c] sm:$0xf] %v262
          %279 = vst [vmem:[#allocation2 + $0x30] sm:$0xf] %v263
          %280 = vst [vmem:[#allocation2 + $0x34] sm:$0xf] %v264
          %281 = vst [vmem:[#allocation2 + $0x38] sm:$0xf] %v265
          %282 = vst [vmem:[#allocation2 + $0x3c] sm:$0xf] %v266
        $region48: #{tpu_custom_call.1} parent=39 // pred_fallthru
          _
        %v283 = vld [vmem:[#allocation2] sm:$0xf]
        %v284 = vld [vmem:[#allocation2 + $0x4] sm:$0xf]
        %v285 = vld [vmem:[#allocation2 + $0x8] sm:$0xf]
        %v286 = vld [vmem:[#allocation2 + $0xc] sm:$0xf]
        %v287 = vld [vmem:[#allocation2 + $0x10] sm:$0xf]
        %v288 = vld [vmem:[#allocation2 + $0x14] sm:$0xf]
        %v289 = vld [vmem:[#allocation2 + $0x18] sm:$0xf]
        %v290 = vld [vmem:[#allocation2 + $0x1c] sm:$0xf]
        %v291 = vld [vmem:[#allocation2 + $0x20] sm:$0xf]
        %v292 = vld [vmem:[#allocation2 + $0x24] sm:$0xf]
        %v293 = vld [vmem:[#allocation2 + $0x28] sm:$0xf]
        %v294 = vld [vmem:[#allocation2 + $0x2c] sm:$0xf]
        %v295 = vld [vmem:[#allocation2 + $0x30] sm:$0xf]
        %v296 = vld [vmem:[#allocation2 + $0x34] sm:$0xf]
        %v297 = vld [vmem:[#allocation2 + $0x38] sm:$0xf]
        %v298 = vld [vmem:[#allocation2 + $0x3c] sm:$0xf]
        %v299 = vld [vmem:[%s0] sm:$0xf]
        %v300 = vld [vmem:[%s0 + $0x4] sm:$0xf]
        %v301 = vld [vmem:[%s0 + $0x8] sm:$0xf]
        %v302 = vld [vmem:[%s0 + $0xc] sm:$0xf]
        %v303 = vld [vmem:[%s0 + $0x10] sm:$0xf]
        %v304 = vld [vmem:[%s0 + $0x14] sm:$0xf]
        %v305 = vld [vmem:[%s0 + $0x18] sm:$0xf]
        %v306 = vld [vmem:[%s0 + $0x1c] sm:$0xf]
        %v307 = vld [vmem:[%s0 + $0x20] sm:$0xf]
        %v308 = vld [vmem:[%s0 + $0x24] sm:$0xf]
        %v309 = vld [vmem:[%s0 + $0x28] sm:$0xf]
        %v310 = vld [vmem:[%s0 + $0x2c] sm:$0xf]
        %v311 = vld [vmem:[%s0 + $0x30] sm:$0xf]
        %v312 = vld [vmem:[%s0 + $0x34] sm:$0xf]
        %v313 = vld [vmem:[%s0 + $0x38] sm:$0xf]
        %v314 = vld [vmem:[%s0 + $0x3c] sm:$0xf]
        %v331 = vunpack.c.l.b16 %v299
        %v332 = vunpack.c.l.b16 %v300
        %v333 = vunpack.c.l.b16 %v301
        %v334 = vunpack.c.l.b16 %v302
        %v335 = vunpack.c.l.b16 %v303
        %v336 = vunpack.c.l.b16 %v304
        %v337 = vunpack.c.l.b16 %v305
        %v338 = vunpack.c.l.b16 %v306
        %v339 = vunpack.c.l.b16 %v307
        %v340 = vunpack.c.l.b16 %v308
        %v341 = vunpack.c.l.b16 %v309
        %v342 = vunpack.c.l.b16 %v310
        %v343 = vunpack.c.l.b16 %v311
        %v344 = vunpack.c.l.b16 %v312
        %v345 = vunpack.c.l.b16 %v313
        %v346 = vunpack.c.l.b16 %v314
        %v347 = vpack.c.b16 %v332, %v331
        %v348 = vpack.c.b16 %v334, %v333
        %v349 = vpack.c.b16 %v336, %v335
        %v350 = vpack.c.b16 %v338, %v337
        %v351 = vpack.c.b16 %v340, %v339
        %v352 = vpack.c.b16 %v342, %v341
        %v353 = vpack.c.b16 %v344, %v343
        %v354 = vpack.c.b16 %v346, %v345
        %v379 = vunpack.c.l.b16 %v283
        %v380 = vunpack.c.l.b16 %v284
        %v381 = vunpack.c.l.b16 %v285
        %v382 = vunpack.c.l.b16 %v286
        %v383 = vunpack.c.l.b16 %v287
        %v384 = vunpack.c.l.b16 %v288
        %v385 = vunpack.c.l.b16 %v289
        %v386 = vunpack.c.l.b16 %v290
        %v387 = vunpack.c.l.b16 %v291
        %v388 = vunpack.c.l.b16 %v292
        %v389 = vunpack.c.l.b16 %v293
        %v390 = vunpack.c.l.b16 %v294
        %v391 = vunpack.c.l.b16 %v295
        %v392 = vunpack.c.l.b16 %v296
        %v393 = vunpack.c.l.b16 %v297
        %v394 = vunpack.c.l.b16 %v298
        %v395 = vpack.c.b16 %v380, %v379
        %v396 = vpack.c.b16 %v382, %v381
        %v397 = vpack.c.b16 %v384, %v383
        %v398 = vpack.c.b16 %v386, %v385
        %v399 = vpack.c.b16 %v388, %v387
        %v400 = vpack.c.b16 %v390, %v389
        %v401 = vpack.c.b16 %v392, %v391
        %v402 = vpack.c.b16 %v394, %v393
        %411 = vmatpush.bf16.msra.mxu0 %v402
        %412 = vmatpush.bf16.msra.mxu0 %v401
        %413 = vmatpush.bf16.msra.mxu0 %v400
        %414 = vmatpush.bf16.msra.mxu0 %v399
        %415 = vmatpush.bf16.msra.mxu0 %v398
        %416 = vmatpush.bf16.msra.mxu0 %v397
        %417 = vmatpush.bf16.msra.mxu0 %v396
        %418 = vmatpush.bf16.msra.mxu0 %v395
        %419 = vmatmul.bf16.gmra.mxu0 %v347
        %v420 = vpop.f32.mrf.mxu0
        %v421 = vadd.f32 0.0, %v420
        %v422 = vpop.f32.mrf.mxu0
        %v423 = vadd.f32 0.0, %v422
        %424 = vmatmul.bf16.gmra.mxu0 %v348
        %v425 = vpop.f32.mrf.mxu0
        %v426 = vadd.f32 0.0, %v425
        %v427 = vpop.f32.mrf.mxu0
        %v428 = vadd.f32 0.0, %v427
        %429 = vmatmul.bf16.gmra.mxu0 %v349
        %v430 = vpop.f32.mrf.mxu0
        %v431 = vadd.f32 0.0, %v430
        %v432 = vpop.f32.mrf.mxu0
        %v433 = vadd.f32 0.0, %v432
        %434 = vmatmul.bf16.gmra.mxu0 %v350
        %v435 = vpop.f32.mrf.mxu0
        %v436 = vadd.f32 0.0, %v435
        %v437 = vpop.f32.mrf.mxu0
        %v438 = vadd.f32 0.0, %v437
        %439 = vmatmul.bf16.gmra.mxu0 %v351
        %v440 = vpop.f32.mrf.mxu0
        %v441 = vadd.f32 0.0, %v440
        %v442 = vpop.f32.mrf.mxu0
        %v443 = vadd.f32 0.0, %v442
        %444 = vmatmul.bf16.gmra.mxu0 %v352
        %v445 = vpop.f32.mrf.mxu0
        %v446 = vadd.f32 0.0, %v445
        %v447 = vpop.f32.mrf.mxu0
        %v448 = vadd.f32 0.0, %v447
        %449 = vmatmul.bf16.gmra.mxu0 %v353
        %v450 = vpop.f32.mrf.mxu0
        %v451 = vadd.f32 0.0, %v450
        %v452 = vpop.f32.mrf.mxu0
        %v453 = vadd.f32 0.0, %v452
        %454 = vmatmul.bf16.gmra.mxu0 %v354
        %v455 = vpop.f32.mrf.mxu0
        %v456 = vadd.f32 0.0, %v455
        %v457 = vpop.f32.mrf.mxu0
        %v458 = vadd.f32 0.0, %v457
        %459 = vdwg.mxu0
        %v460 = vld [vmem:[%s1] sm:$0xff]
        %v461 = vld [vmem:[%s1 + $0x8] sm:$0xff]
        %v462 = vld [vmem:[%s1 + $0x10] sm:$0xff]
        %v463 = vld [vmem:[%s1 + $0x18] sm:$0xff]
        %v464 = vld [vmem:[%s1 + $0x20] sm:$0xff]
        %v465 = vld [vmem:[%s1 + $0x28] sm:$0xff]
        %v466 = vld [vmem:[%s1 + $0x30] sm:$0xff]
        %v467 = vld [vmem:[%s1 + $0x38] sm:$0xff]
        %v468 = vld [vmem:[%s1 + $0x40] sm:$0xff]
        %v469 = vld [vmem:[%s1 + $0x48] sm:$0xff]
        %v470 = vld [vmem:[%s1 + $0x50] sm:$0xff]
        %v471 = vld [vmem:[%s1 + $0x58] sm:$0xff]
        %v472 = vld [vmem:[%s1 + $0x60] sm:$0xff]
        %v473 = vld [vmem:[%s1 + $0x68] sm:$0xff]
        %v474 = vld [vmem:[%s1 + $0x70] sm:$0xff]
        %v475 = vld [vmem:[%s1 + $0x78] sm:$0xff]
        %477 = vset.pattern.permute.xlu0 0
        %478 = vperm.xlu0 %477, %v460
        %v479 = vpop.permute.xlu0 %478
        %482 = vset.pattern.permute.xlu0 0
        %483 = vperm.xlu0 %482, %v461
        %v484 = vpop.permute.xlu0 %483
        %487 = vset.pattern.permute.xlu0 0
        %488 = vperm.xlu0 %487, %v462
        %v489 = vpop.permute.xlu0 %488
        %492 = vset.pattern.permute.xlu0 0
        %493 = vperm.xlu0 %492, %v463
        %v494 = vpop.permute.xlu0 %493
        %497 = vset.pattern.permute.xlu0 0
        %498 = vperm.xlu0 %497, %v464
        %v499 = vpop.permute.xlu0 %498
        %502 = vset.pattern.permute.xlu0 0
        %503 = vperm.xlu0 %502, %v465
        %v504 = vpop.permute.xlu0 %503
        %507 = vset.pattern.permute.xlu0 0
        %508 = vperm.xlu0 %507, %v466
        %v509 = vpop.permute.xlu0 %508
        %512 = vset.pattern.permute.xlu0 0
        %513 = vperm.xlu0 %512, %v467
        %v514 = vpop.permute.xlu0 %513
        %517 = vset.pattern.permute.xlu0 0
        %518 = vperm.xlu0 %517, %v468
        %v519 = vpop.permute.xlu0 %518
        %522 = vset.pattern.permute.xlu0 0
        %523 = vperm.xlu0 %522, %v469
        %v524 = vpop.permute.xlu0 %523
        %527 = vset.pattern.permute.xlu0 0
        %528 = vperm.xlu0 %527, %v470
        %v529 = vpop.permute.xlu0 %528
        %532 = vset.pattern.permute.xlu0 0
        %533 = vperm.xlu0 %532, %v471
        %v534 = vpop.permute.xlu0 %533
        %537 = vset.pattern.permute.xlu0 0
        %538 = vperm.xlu0 %537, %v472
        %v539 = vpop.permute.xlu0 %538
        %542 = vset.pattern.permute.xlu0 0
        %543 = vperm.xlu0 %542, %v473
        %v544 = vpop.permute.xlu0 %543
        %547 = vset.pattern.permute.xlu0 0
        %548 = vperm.xlu0 %547, %v474
        %v549 = vpop.permute.xlu0 %548
        %552 = vset.pattern.permute.xlu0 0
        %553 = vperm.xlu0 %552, %v475
        %v554 = vpop.permute.xlu0 %553
        %v556 = vmul.f32 %v421, %v479
        %v557 = vmul.f32 %v423, %v484
        %v558 = vmul.f32 %v426, %v489
        %v559 = vmul.f32 %v428, %v494
        %v560 = vmul.f32 %v431, %v499
        %v561 = vmul.f32 %v433, %v504
        %v562 = vmul.f32 %v436, %v509
        %v563 = vmul.f32 %v438, %v514
        %v564 = vmul.f32 %v441, %v519
        %v565 = vmul.f32 %v443, %v524
        %v566 = vmul.f32 %v446, %v529
        %v567 = vmul.f32 %v448, %v534
        %v568 = vmul.f32 %v451, %v539
        %v569 = vmul.f32 %v453, %v544
        %v570 = vmul.f32 %v456, %v549
        %v571 = vmul.f32 %v458, %v554
        %v572 = vpack.c.bf16 %v557, %v556
        %v573 = vpack.c.bf16 %v559, %v558
        %v574 = vpack.c.bf16 %v561, %v560
        %v575 = vpack.c.bf16 %v563, %v562
        %v576 = vpack.c.bf16 %v565, %v564
        %v577 = vpack.c.bf16 %v567, %v566
        %v578 = vpack.c.bf16 %v569, %v568
        %v579 = vpack.c.bf16 %v571, %v570
        %v580 = vld [vmem:[%s218] sm:$0xf]
        %v581 = vld [vmem:[%s218 + $0x4] sm:$0xf]
        %v582 = vld [vmem:[%s218 + $0x8] sm:$0xf]
        %v583 = vld [vmem:[%s218 + $0xc] sm:$0xf]
        %v584 = vld [vmem:[%s218 + $0x10] sm:$0xf]
        %v585 = vld [vmem:[%s218 + $0x14] sm:$0xf]
        %v586 = vld [vmem:[%s218 + $0x18] sm:$0xf]
        %v587 = vld [vmem:[%s218 + $0x1c] sm:$0xf]
        %v588 = vld [vmem:[%s218 + $0x20] sm:$0xf]
        %v589 = vld [vmem:[%s218 + $0x24] sm:$0xf]
        %v590 = vld [vmem:[%s218 + $0x28] sm:$0xf]
        %v591 = vld [vmem:[%s218 + $0x2c] sm:$0xf]
        %v592 = vld [vmem:[%s218 + $0x30] sm:$0xf]
        %v593 = vld [vmem:[%s218 + $0x34] sm:$0xf]
        %v594 = vld [vmem:[%s218 + $0x38] sm:$0xf]
        %v595 = vld [vmem:[%s218 + $0x3c] sm:$0xf]
        %v596 = vld [vmem:[%s218 + $0x40] sm:$0xf]
        %v597 = vld [vmem:[%s218 + $0x44] sm:$0xf]
        %v598 = vld [vmem:[%s218 + $0x48] sm:$0xf]
        %v599 = vld [vmem:[%s218 + $0x4c] sm:$0xf]
        %v600 = vld [vmem:[%s218 + $0x50] sm:$0xf]
        %v601 = vld [vmem:[%s218 + $0x54] sm:$0xf]
        %v602 = vld [vmem:[%s218 + $0x58] sm:$0xf]
        %v603 = vld [vmem:[%s218 + $0x5c] sm:$0xf]
        %v604 = vld [vmem:[%s218 + $0x60] sm:$0xf]
        %v605 = vld [vmem:[%s218 + $0x64] sm:$0xf]
        %v606 = vld [vmem:[%s218 + $0x68] sm:$0xf]
        %v607 = vld [vmem:[%s218 + $0x6c] sm:$0xf]
        %v608 = vld [vmem:[%s218 + $0x70] sm:$0xf]
        %v609 = vld [vmem:[%s218 + $0x74] sm:$0xf]
        %v610 = vld [vmem:[%s218 + $0x78] sm:$0xf]
        %v611 = vld [vmem:[%s218 + $0x7c] sm:$0xf]
        %v628 = vunpack.c.l.b16 %v596
        %v629 = vunpack.c.l.b16 %v597
        %v630 = vunpack.c.l.b16 %v598
        %v631 = vunpack.c.l.b16 %v599
        %v632 = vunpack.c.l.b16 %v600
        %v633 = vunpack.c.l.b16 %v601
        %v634 = vunpack.c.l.b16 %v602
        %v635 = vunpack.c.l.b16 %v603
        %v636 = vunpack.c.l.b16 %v604
        %v637 = vunpack.c.l.b16 %v605
        %v638 = vunpack.c.l.b16 %v606
        %v639 = vunpack.c.l.b16 %v607
        %v640 = vunpack.c.l.b16 %v608
        %v641 = vunpack.c.l.b16 %v609
        %v642 = vunpack.c.l.b16 %v610
        %v643 = vunpack.c.l.b16 %v611
        %v644 = vpack.c.b16 %v629, %v628
        %v645 = vpack.c.b16 %v631, %v630
        %v646 = vpack.c.b16 %v633, %v632
        %v647 = vpack.c.b16 %v635, %v634
        %v648 = vpack.c.b16 %v637, %v636
        %v649 = vpack.c.b16 %v639, %v638
        %v650 = vpack.c.b16 %v641, %v640
        %v651 = vpack.c.b16 %v643, %v642
        %660 = vmatpush.bf16.msra.mxu0 %v651
        %661 = vmatpush.bf16.msra.mxu0 %v650
        %662 = vmatpush.bf16.msra.mxu0 %v649
        %663 = vmatpush.bf16.msra.mxu0 %v648
        %664 = vmatpush.bf16.msra.mxu0 %v647
        %665 = vmatpush.bf16.msra.mxu0 %v646
        %666 = vmatpush.bf16.msra.mxu0 %v645
        %667 = vmatpush.bf16.msra.mxu0 %v644
        %668 = vmatmul.bf16.gmra.mxu0 %v572
        %v669 = vpop.f32.mrf.mxu0
        %v670 = vadd.f32 0.0, %v669
        %v671 = vpop.f32.mrf.mxu0
        %v672 = vadd.f32 0.0, %v671
        %673 = vmatmul.bf16.gmra.mxu0 %v573
        %v674 = vpop.f32.mrf.mxu0
        %v675 = vadd.f32 0.0, %v674
        %v676 = vpop.f32.mrf.mxu0
        %v677 = vadd.f32 0.0, %v676
        %678 = vmatmul.bf16.gmra.mxu0 %v574
        %v679 = vpop.f32.mrf.mxu0
        %v680 = vadd.f32 0.0, %v679
        %v681 = vpop.f32.mrf.mxu0
        %v682 = vadd.f32 0.0, %v681
        %683 = vmatmul.bf16.gmra.mxu0 %v575
        %v684 = vpop.f32.mrf.mxu0
        %v685 = vadd.f32 0.0, %v684
        %v686 = vpop.f32.mrf.mxu0
        %v687 = vadd.f32 0.0, %v686
        %688 = vmatmul.bf16.gmra.mxu0 %v576
        %v689 = vpop.f32.mrf.mxu0
        %v690 = vadd.f32 0.0, %v689
        %v691 = vpop.f32.mrf.mxu0
        %v692 = vadd.f32 0.0, %v691
        %693 = vmatmul.bf16.gmra.mxu0 %v577
        %v694 = vpop.f32.mrf.mxu0
        %v695 = vadd.f32 0.0, %v694
        %v696 = vpop.f32.mrf.mxu0
        %v697 = vadd.f32 0.0, %v696
        %698 = vmatmul.bf16.gmra.mxu0 %v578
        %v699 = vpop.f32.mrf.mxu0
        %v700 = vadd.f32 0.0, %v699
        %v701 = vpop.f32.mrf.mxu0
        %v702 = vadd.f32 0.0, %v701
        %703 = vmatmul.bf16.gmra.mxu0 %v579
        %v704 = vpop.f32.mrf.mxu0
        %v705 = vadd.f32 0.0, %v704
        %v706 = vpop.f32.mrf.mxu0
        %v707 = vadd.f32 0.0, %v706
        %708 = vdwg.mxu0
        %v725 = vunpack.c.l.b16 %v580
        %v726 = vunpack.c.l.b16 %v581
        %v727 = vunpack.c.l.b16 %v582
        %v728 = vunpack.c.l.b16 %v583
        %v729 = vunpack.c.l.b16 %v584
        %v730 = vunpack.c.l.b16 %v585
        %v731 = vunpack.c.l.b16 %v586
        %v732 = vunpack.c.l.b16 %v587
        %v733 = vunpack.c.l.b16 %v588
        %v734 = vunpack.c.l.b16 %v589
        %v735 = vunpack.c.l.b16 %v590
        %v736 = vunpack.c.l.b16 %v591
        %v737 = vunpack.c.l.b16 %v592
        %v738 = vunpack.c.l.b16 %v593
        %v739 = vunpack.c.l.b16 %v594
        %v740 = vunpack.c.l.b16 %v595
        %v741 = vpack.c.b16 %v726, %v725
        %v742 = vpack.c.b16 %v728, %v727
        %v743 = vpack.c.b16 %v730, %v729
        %v744 = vpack.c.b16 %v732, %v731
        %v745 = vpack.c.b16 %v734, %v733
        %v746 = vpack.c.b16 %v736, %v735
        %v747 = vpack.c.b16 %v738, %v737
        %v748 = vpack.c.b16 %v740, %v739
        %757 = vmatpush.bf16.msra.mxu0 %v748
        %758 = vmatpush.bf16.msra.mxu0 %v747
        %759 = vmatpush.bf16.msra.mxu0 %v746
        %760 = vmatpush.bf16.msra.mxu0 %v745
        %761 = vmatpush.bf16.msra.mxu0 %v744
        %762 = vmatpush.bf16.msra.mxu0 %v743
        %763 = vmatpush.bf16.msra.mxu0 %v742
        %764 = vmatpush.bf16.msra.mxu0 %v741
        %765 = vmatmul.bf16.gmra.mxu0 %v395
        %v766 = vpop.f32.mrf.mxu0
        %v767 = vadd.f32 %v670, %v766
        %v768 = vpop.f32.mrf.mxu0
        %v769 = vadd.f32 %v672, %v768
        %770 = vmatmul.bf16.gmra.mxu0 %v396
        %v771 = vpop.f32.mrf.mxu0
        %v772 = vadd.f32 %v675, %v771
        %v773 = vpop.f32.mrf.mxu0
        %v774 = vadd.f32 %v677, %v773
        %775 = vmatmul.bf16.gmra.mxu0 %v397
        %v776 = vpop.f32.mrf.mxu0
        %v777 = vadd.f32 %v680, %v776
        %v778 = vpop.f32.mrf.mxu0
        %v779 = vadd.f32 %v682, %v778
        %780 = vmatmul.bf16.gmra.mxu0 %v398
        %v781 = vpop.f32.mrf.mxu0
        %v782 = vadd.f32 %v685, %v781
        %v783 = vpop.f32.mrf.mxu0
        %v784 = vadd.f32 %v687, %v783
        %785 = vmatmul.bf16.gmra.mxu0 %v399
        %v786 = vpop.f32.mrf.mxu0
        %v787 = vadd.f32 %v690, %v786
        %v788 = vpop.f32.mrf.mxu0
        %v789 = vadd.f32 %v692, %v788
        %790 = vmatmul.bf16.gmra.mxu0 %v400
        %v791 = vpop.f32.mrf.mxu0
        %v792 = vadd.f32 %v695, %v791
        %v793 = vpop.f32.mrf.mxu0
        %v794 = vadd.f32 %v697, %v793
        %795 = vmatmul.bf16.gmra.mxu0 %v401
        %v796 = vpop.f32.mrf.mxu0
        %v797 = vadd.f32 %v700, %v796
        %v798 = vpop.f32.mrf.mxu0
        %v799 = vadd.f32 %v702, %v798
        %800 = vmatmul.bf16.gmra.mxu0 %v402
        %v801 = vpop.f32.mrf.mxu0
        %v802 = vadd.f32 %v705, %v801
        %v803 = vpop.f32.mrf.mxu0
        %v804 = vadd.f32 %v707, %v803
        %805 = vdwg.mxu0
        %v806 = vld [vmem:[%s246] sm:$0x1]
        %v808 = vperm.slane %v806, 0
        %v810 = vadd.f32 %v767, %v808
        %v811 = vadd.f32 %v769, %v808
        %v812 = vadd.f32 %v772, %v808
        %v813 = vadd.f32 %v774, %v808
        %v814 = vadd.f32 %v777, %v808
        %v815 = vadd.f32 %v779, %v808
        %v816 = vadd.f32 %v782, %v808
        %v817 = vadd.f32 %v784, %v808
        %v818 = vadd.f32 %v787, %v808
        %v819 = vadd.f32 %v789, %v808
        %v820 = vadd.f32 %v792, %v808
        %v821 = vadd.f32 %v794, %v808
        %v822 = vadd.f32 %v797, %v808
        %v823 = vadd.f32 %v799, %v808
        %v824 = vadd.f32 %v802, %v808
        %v825 = vadd.f32 %v804, %v808
        %v826 = vpack.c.bf16 %v810, %v810
        %v827 = vpack.c.bf16 %v811, %v811
        %v828 = vpack.c.bf16 %v812, %v812
        %v829 = vpack.c.bf16 %v813, %v813
        %v830 = vpack.c.bf16 %v814, %v814
        %v831 = vpack.c.bf16 %v815, %v815
        %v832 = vpack.c.bf16 %v816, %v816
        %v833 = vpack.c.bf16 %v817, %v817
        %v834 = vpack.c.bf16 %v818, %v818
        %v835 = vpack.c.bf16 %v819, %v819
        %v836 = vpack.c.bf16 %v820, %v820
        %v837 = vpack.c.bf16 %v821, %v821
        %v838 = vpack.c.bf16 %v822, %v822
        %v839 = vpack.c.bf16 %v823, %v823
        %v840 = vpack.c.bf16 %v824, %v824
        %v841 = vpack.c.bf16 %v825, %v825
        %842 = vst [vmem:[#allocation2] sm:$0xf] %v826
        %843 = vst [vmem:[#allocation2 + $0x4] sm:$0xf] %v827
        %844 = vst [vmem:[#allocation2 + $0x8] sm:$0xf] %v828
        %845 = vst [vmem:[#allocation2 + $0xc] sm:$0xf] %v829
        %846 = vst [vmem:[#allocation2 + $0x10] sm:$0xf] %v830
        %847 = vst [vmem:[#allocation2 + $0x14] sm:$0xf] %v831
        %848 = vst [vmem:[#allocation2 + $0x18] sm:$0xf] %v832
        %849 = vst [vmem:[#allocation2 + $0x1c] sm:$0xf] %v833
        %850 = vst [vmem:[#allocation2 + $0x20] sm:$0xf] %v834
        %851 = vst [vmem:[#allocation2 + $0x24] sm:$0xf] %v835
        %852 = vst [vmem:[#allocation2 + $0x28] sm:$0xf] %v836
        %853 = vst [vmem:[#allocation2 + $0x2c] sm:$0xf] %v837
        %854 = vst [vmem:[#allocation2 + $0x30] sm:$0xf] %v838
        %855 = vst [vmem:[#allocation2 + $0x34] sm:$0xf] %v839
        %856 = vst [vmem:[#allocation2 + $0x38] sm:$0xf] %v840
        %857 = vst [vmem:[#allocation2 + $0x3c] sm:$0xf] %v841
        %p858 = scmp.eq.s32.totalorder %s20, 1
        // Predicated region
        $region49: #{tpu_custom_call.1} parent=39 // pred_check
          %p859 = pneg %p858
        $region50: #{tpu_custom_call.1} parent=39 // pred_check_branch
          %861 = sbr.rel (%p859) target = $region52
        $region51: #{tpu_custom_call.1} parent=39 // pred_region
          %862 = vst [vmem:[#allocation6] sm:$0xff] %v810
          %863 = vst [vmem:[#allocation6 + $0x8] sm:$0xff] %v811
          %864 = vst [vmem:[#allocation6 + $0x10] sm:$0xff] %v812
          %865 = vst [vmem:[#allocation6 + $0x18] sm:$0xff] %v813
          %866 = vst [vmem:[#allocation6 + $0x20] sm:$0xff] %v814
          %867 = vst [vmem:[#allocation6 + $0x28] sm:$0xff] %v815
          %868 = vst [vmem:[#allocation6 + $0x30] sm:$0xff] %v816
          %869 = vst [vmem:[#allocation6 + $0x38] sm:$0xff] %v817
          %870 = vst [vmem:[#allocation6 + $0x40] sm:$0xff] %v818
          %871 = vst [vmem:[#allocation6 + $0x48] sm:$0xff] %v819
          %872 = vst [vmem:[#allocation6 + $0x50] sm:$0xff] %v820
          %873 = vst [vmem:[#allocation6 + $0x58] sm:$0xff] %v821
          %874 = vst [vmem:[#allocation6 + $0x60] sm:$0xff] %v822
          %875 = vst [vmem:[#allocation6 + $0x68] sm:$0xff] %v823
          %876 = vst [vmem:[#allocation6 + $0x70] sm:$0xff] %v824
          %877 = vst [vmem:[#allocation6 + $0x78] sm:$0xff] %v825
        $region52: #{tpu_custom_call.1} parent=39 // pred_fallthru
          _
        // Predicated region
        $region53: #{tpu_custom_call.1} parent=39 // pred_check
          %p878 = pneg %p148
        $region54: #{tpu_custom_call.1} parent=39 // pred_check_branch
          %880 = sbr.rel (%p878) target = $region56
        $region55: #{tpu_custom_call.1} parent=39 // pred_region
          %882 = vsyncadd [#allocation5], 0
          %s883 = sshll.u32 [#allocation6], 4
          %s884 = int_to_ptr.vmem [resolvable:$true] %s883
          %s885 = sshll.u32 %s5, 4
          %s886 = int_to_ptr.hbm [resolvable:$true] %s885
          %891 = dma.vmem_to_hbm [thread:$0]  %s884, 2048, %s886, [#allocation5], 128, 128, 8
        $region56: #{tpu_custom_call.1} parent=39 // pred_fallthru
          _
        // Predicated region
        $region57: #{tpu_custom_call.1} parent=39 // pred_check
          %p892 = pneg %p148
        $region58: #{tpu_custom_call.1} parent=39 // pred_check_branch
          %894 = sbr.rel (%p892) target = $region60
        $region59: #{tpu_custom_call.1} parent=39 // pred_region
          %896 = dma.done [#allocation5], 2048
        $region60: #{tpu_custom_call.1} parent=39 // pred_fallthru
          _
      $region40: #{tpu_custom_call.1} parent=5 // pred_fallthru
        _
      %p897 = scmp.le.s32.totalorder 2, %s15
      // Predicated region
      $region61: #{tpu_custom_call.1} parent=5 // pred_check
        %p898 = pneg %p897
      $region62: #{tpu_custom_call.1} parent=5 // pred_check_branch
        %900 = sbr.rel (%p898) target = $region64
      $region63: #{tpu_custom_call.1} parent=5 // pred_region
        %s901 = ssub.s32 %s15, 2
      $region64: #{tpu_custom_call.1} parent=5 // pred_fallthru
        _
    $region6: #{tpu_custom_call.1} parent=1 // loop_footer
      %s19 = sadd.s32 1, %s15
    $region7: #{tpu_custom_call.1} parent=1 // loop_footer_branch
      %14 = sbr.rel target = $region3
    $region8: #{tpu_custom_call.1} parent=1 // loop_exit
      _
    %902 = vsyncpa [#allocation4], 1
    %s903 = scalar_lea.sflag [#allocation4], 1
    %904 = vsyncpa %s903, 1
    %905 = vsyncpa [#allocation5], 1
    %s906 = scalar_lea.sflag [#allocation5], 1
    %907 = vsyncpa %s906, 1

</llo_original>
